<compile_context>
chip_gen: v7x
topology: tpu7x:2x2x1
jax: 0.10.0
libtpu: 0.0.40
codegen_flags: <defaults>
</compile_context>

<pallas_src>
import jax
import jax.numpy as jnp
from jax.experimental import pallas as pl
from jax.experimental.pallas import tpu as pltpu


def _sgf_kernel(x_ref, w_ref, r_ref, o_ref):
    """One fused grid step.

    x_ref : (TR, P*2C) packed rows; per vertex the lanes are [r0,i0,r1,i1,...]
    w_ref : (P*2C, P*2C) block-diagonal complex-linear weights (interleaved)
    r_ref : (P*2C, P*C)  block-diagonal 0/1 pair-reduction matrix
    o_ref : (TR, P*C)
    """
    x = x_ref[...]
    # Fused complex-linear matmul:
    #   y[:, q*2C + 2c] = Breal_c , y[:, q*2C + 2c + 1] = Bimag_c   (vertex q)
    y = jnp.dot(x, w_ref[...], preferred_element_type=jnp.float32)
    xf = x if x.dtype == jnp.float32 else x.astype(jnp.float32)
    # p[:, 2c] = xr_c * Breal_c ; p[:, 2c+1] = xi_c * Bimag_c   (per vertex block)
    p = xf * y
    # Even/odd pair reduction + de-interleave via a tiny 0/1 MXU matmul.
    dots = jnp.dot(p, r_ref[...], preferred_element_type=jnp.float32)
    o_ref[...] = jnp.tanh(dots).astype(o_ref.dtype)


def _pick_packing(V, C):
    """Largest P <= target dividing V; target gives a ~256-lane contraction."""
    if C >= 128:
        return 1                       # lanes already dense, no packing needed
    target = max(1, min(16, 128 // C))
    for p in range(target, 0, -1):
        if V % p == 0:
            return p
    return 1


def spatial_gradient_features(vectors, w_re, w_im=None, *, tile_v=4096):
    """SpatialGradientFeatures forward.

    vectors : (V, C, 2)
    w_re    : (C, C) nn.Linear weight (C_out, C_in)  == A_re.weight
    w_im    : (C, C) nn.Linear weight                == A_im.weight
              (pass None for with_gradient_rotations=False; then w_re == A.weight)
    returns : (V, C)
    """
    V, C, two = vectors.shape
    assert two == 2
    out_dtype = vectors.dtype
    w_dtype = jnp.bfloat16 if out_dtype == jnp.bfloat16 else jnp.float32
    if w_im is None:  # with_gradient_rotations=False degenerates to w_im == 0
        w_im = jnp.zeros_like(w_re)

    P = _pick_packing(V, C)
    rows = V // P
    K = P * 2 * C          # packed input width == contraction
    N = P * C              # packed output width

    # --- zero-copy input layout: contiguous reshape, P vertices per row ------
    x = vectors.reshape(rows, K)

    # --- complex-linear weight, permuted to interleaved [r, i] ordering ------
    wre_t = w_re.T.astype(w_dtype)          # (C_in, C_out)
    wim_t = w_im.T.astype(w_dtype)
    # w_perm[2k + a, 2c + b]: a=0 row multiplies xr_k, a=1 row multiplies xi_k
    #                         b=0 col produces Breal_c, b=1 col produces Bimag_c
    w4 = jnp.stack(
        [jnp.stack([wre_t, wim_t], axis=-1),     # xr rows: [ wre_t | wim_t ]
         jnp.stack([-wim_t, wre_t], axis=-1)],   # xi rows: [-wim_t | wre_t ]
        axis=1)                                  # (C, 2, C, 2)
    w_perm = w4.reshape(2 * C, 2 * C)
    # Pair-reduction / de-interleave: rows 2c and 2c+1 both map to column c.
    r_base = jnp.repeat(jnp.eye(C, dtype=jnp.float32), 2, axis=0)      # (2C, C)
    if P > 1:  # block-diagonal expansion for the packed layout
        w_big = jnp.kron(jnp.eye(P, dtype=w_dtype), w_perm)            # (K, K)
        r_big = jnp.kron(jnp.eye(P, dtype=jnp.float32), r_base)        # (K, N)
    else:
        w_big, r_big = w_perm, r_base

    # --- row tiling: big tiles, VMEM-budgeted, >=2 grid steps for megacore ---
    elt = jnp.dtype(out_dtype).itemsize
    per_row_bytes = (K + N) * elt * 2            # double-buffered in + out
    budget = 8 * 1024 * 1024                     # fits v5e's 16 MiB scoped VMEM
    tile_rows = max(1, tile_v // P)
    tile_rows = min(tile_rows, max(8, budget // per_row_bytes))
    if rows <= 8:
        tile_rows = rows                         # full-dim block is always legal
    else:
        tile_rows = min(tile_rows, pl.cdiv(rows, 2))   # let v7x use both TCs
        tile_rows = max(8, (tile_rows // 8) * 8)       # sublane-aligned block
    grid_n = pl.cdiv(rows, tile_rows)            # partial last block OK

    w_bytes = jnp.dtype(w_dtype).itemsize
    cost = pl.CostEstimate(
        flops=2 * rows * K * K                   # fused complex-linear matmul
        + 2 * rows * K * N                       # pair-reduction matmul
        + 2 * rows * K,                          # elementwise product
        transcendentals=rows * N,                # tanh
        bytes_accessed=rows * K * elt + rows * N * elt
        + K * K * w_bytes + K * N * 4,
    )

    out = pl.pallas_call(
        _sgf_kernel,
        out_shape=jax.ShapeDtypeStruct((rows, N), out_dtype),
        grid_spec=pltpu.PrefetchScalarGridSpec(
            num_scalar_prefetch=0,
            grid=(grid_n,),
            in_specs=[pl.BlockSpec((tile_rows, K), lambda i: (i, 0)),
                      pl.BlockSpec((K, K), lambda i: (0, 0)),
                      pl.BlockSpec((K, N), lambda i: (0, 0))],
            out_specs=pl.BlockSpec((tile_rows, N), lambda i: (i, 0)),
        ),
        compiler_params=pltpu.CompilerParams(
            dimension_semantics=("parallel",)),
        cost_estimate=cost,
    )(x, w_big, r_big)

    return out.reshape(V, C)


def _reference(vectors, w_re, w_im):
    xr = vectors[..., 0]
    xi = vectors[..., 1]
    breal = xr @ w_re.T - xi @ w_im.T
    bimag = xi @ w_re.T + xr @ w_im.T
    return jnp.tanh(xr * breal + xi * bimag)


if __name__ == "__main__":
    key = jax.random.PRNGKey(0)
    k1, k2, k3, k4, k5 = jax.random.split(key, 5)

    V, C = 2048, 32  # V vertices, C channels (C_inout)
    vectors = jax.random.normal(k1, (V, C, 2), dtype=jnp.float32)
    bound = 1.0 / (C ** 0.5)
    w_re = jax.random.uniform(k2, (C, C), jnp.float32, -bound, bound)
    w_im = jax.random.uniform(k3, (C, C), jnp.float32, -bound, bound)

    # f32, V divisible by packing factor.
    out = jax.block_until_ready(spatial_gradient_features(vectors, w_re, w_im))
    ref = _reference(vectors, w_re, w_im)
    assert out.shape == (V, C)
    assert jnp.allclose(out, ref, atol=5e-5, rtol=5e-5), "mismatch vs reference"

    # Ragged packed-row count (exercises Pallas partial last block, no jnp.pad).
    V2 = 1500
    vec2 = jax.random.normal(k4, (V2, C, 2), dtype=jnp.float32)
    out2 = jax.block_until_ready(
        spatial_gradient_features(vec2, w_re, w_im, tile_v=512))
    ref2 = _reference(vec2, w_re, w_im)
    assert out2.shape == (V2, C)
    assert jnp.allclose(out2, ref2, atol=5e-5, rtol=5e-5), "mismatch (ragged V)"

    # Prime V -> packing falls back to P=1 (masked-lane path still correct).
    V3 = 331
    vec3 = jax.random.normal(k5, (V3, C, 2), dtype=jnp.float32)
    out3 = jax.block_until_ready(spatial_gradient_features(vec3, w_re, w_im))
    ref3 = _reference(vec3, w_re, w_im)
    assert out3.shape == (V3, C)
    assert jnp.allclose(out3, ref3, atol=5e-5, rtol=5e-5), "mismatch (P=1 path)"

    # bf16 fast path: bf16 MXU operands, f32 accumulate / elementwise / tanh.
    vec_bf = vectors.astype(jnp.bfloat16)
    w_re_bf = w_re.astype(jnp.bfloat16)
    w_im_bf = w_im.astype(jnp.bfloat16)
    out_bf = jax.block_until_ready(
        spatial_gradient_features(vec_bf, w_re_bf, w_im_bf))
    ref_bf = _reference(vec_bf.astype(jnp.float32), w_re_bf.astype(jnp.float32),
                        w_im_bf.astype(jnp.float32))
    assert out_bf.shape == (V, C) and out_bf.dtype == jnp.bfloat16
    assert jnp.allclose(out_bf.astype(jnp.float32), ref_bf,
                        atol=2e-2, rtol=2e-2), "mismatch (bf16 path)"

    print("KERNEL_OK")
</pallas_src>

<mosaic_0001>
module attributes {stable_mosaic.version = 11 : i64} {
  func.func @_sgf_kernel(%arg0: i32, %arg1: memref<256x256xf32, #tpu.memory_space<vmem>>, %arg2: memref<256x256xf32, #tpu.memory_space<vmem>>, %arg3: memref<256x128xf32, #tpu.memory_space<vmem>>, %arg4: memref<256x128xf32, #tpu.memory_space<vmem>>) attributes {dimension_semantics = [#tpu.dimension_semantics<parallel>], iteration_bounds = array<i64: 2>, scalar_prefetch = 0 : i64, scratch_operands = 0 : i64, tpu.core_type = #tpu.core_type<tc>, window_params = [{transform_indices = @transform_0, window_bounds = array<i64: 256, 256>}, {pipeline_mode = #tpu.pipeline_mode<synchronous>, transform_indices = @transform_1, window_bounds = array<i64: 256, 256>}, {pipeline_mode = #tpu.pipeline_mode<synchronous>, transform_indices = @transform_2, window_bounds = array<i64: 256, 128>}, {transform_indices = @transform_3, window_bounds = array<i64: 256, 128>}]} {
    %c0 = arith.constant 0 : index
    %c0_0 = arith.constant 0 : index
    %0 = vector.load %arg1[%c0, %c0_0] : memref<256x256xf32, #tpu.memory_space<vmem>>, vector<256x256xf32>
    %c0_1 = arith.constant 0 : index
    %c0_2 = arith.constant 0 : index
    %1 = vector.load %arg2[%c0_1, %c0_2] : memref<256x256xf32, #tpu.memory_space<vmem>>, vector<256x256xf32>
    %cst = arith.constant dense<0.000000e+00> : vector<256x256xf32>
    %2 = tpu.matmul %0, %1, %cst {dimension_numbers = #tpu.dot_dimension_numbers<[1], [0], [0], [1], [0, 0, 1, 1], [], []>} : vector<256x256xf32>, vector<256x256xf32>, vector<256x256xf32> -> vector<256x256xf32>
    %3 = arith.mulf %0, %2 : vector<256x256xf32>
    %c0_3 = arith.constant 0 : index
    %c0_4 = arith.constant 0 : index
    %4 = vector.load %arg3[%c0_3, %c0_4] : memref<256x128xf32, #tpu.memory_space<vmem>>, vector<256x128xf32>
    %cst_5 = arith.constant dense<0.000000e+00> : vector<256x128xf32>
    %5 = tpu.matmul %3, %4, %cst_5 {dimension_numbers = #tpu.dot_dimension_numbers<[1], [0], [0], [1], [0, 0, 1, 1], [], []>} : vector<256x256xf32>, vector<256x128xf32>, vector<256x128xf32> -> vector<256x128xf32>
    %6 = math.tanh %5 : vector<256x128xf32>
    %c0_6 = arith.constant 0 : index
    %c0_7 = arith.constant 0 : index
    %7 = vector.load %arg4[%c0_6, %c0_7] : memref<256x128xf32, #tpu.memory_space<vmem>>, vector<256x128xf32>
    tpu.vector_store %arg4[%c0_6, %c0_7], %6 {strides = array<i32>} : memref<256x128xf32, #tpu.memory_space<vmem>>, vector<256x128xf32>,
    return
  }
  func.func @transform_0(%arg0: i32) -> (i32, i32) {
    %c0_i32 = arith.constant 0 : i32
    %c0_i32_0 = arith.constant 0 : i32
    return %arg0, %c0_i32 : i32, i32
  }
  func.func @transform_1(%arg0: i32) -> (i32, i32) {
    %c0_i32 = arith.constant 0 : i32
    %c0_i32_0 = arith.constant 0 : i32
    %c0_i32_1 = arith.constant 0 : i32
    return %c0_i32, %c0_i32_0 : i32, i32
  }
  func.func @transform_2(%arg0: i32) -> (i32, i32) {
    %c0_i32 = arith.constant 0 : i32
    %c0_i32_0 = arith.constant 0 : i32
    %c0_i32_1 = arith.constant 0 : i32
    return %c0_i32, %c0_i32_0 : i32, i32
  }
  func.func @transform_3(%arg0: i32) -> (i32, i32) {
    %c0_i32 = arith.constant 0 : i32
    %c0_i32_0 = arith.constant 0 : i32
    return %arg0, %c0_i32 : i32, i32
  }
}

</mosaic_0001>

<llo_original>
// kernel: tpu_custom_call.1
$region0: #{tpu_custom_call.1}
  #allocation0 [shape = 'u32[]', space=smem, size = 0x4, offset = 0x4, fixed_abs, tag = 'smem constant byte address 0x4 - core index']
  #allocation1 [shape = 'u32[144,128]{1,0:T(1,128)}', space=vmem, size = 0x12000, scoped, tag = 'internal scratch']
  %s0 = inlined_call_operand.hbm [shape: f32[512,256], index: 0, kind: input, shape index: {}]
  %s1 = inlined_call_operand.hbm [shape: f32[256,256], index: 1, kind: input, shape index: {}]
  %s2 = inlined_call_operand.hbm [shape: f32[256,128], index: 2, kind: input, shape index: {}]
  %s3 = inlined_call_operand.hbm [shape: f32[512,128], index: 3, kind: output, shape index: {}]
  %s4 = sld [smem:[#allocation0]]
  $region57: #{tpu_custom_call.1} parent=0
    _
  %s6 = ssub.s32 1, %s4
  %s7 = scalar_select 0, %s6, %s4
  $region1: #{tpu_custom_call.1} parent=0
    #allocation2 [shape = 'u8[524288]{0}', space=vmem, size = 0x80000, scoped, tag = 'input window, operand 0']
    #allocation3 [shape = 's32[2]{0}', space=sflag, size = 0x8, scoped, tag = 'scoped memory for tpu_custom_call.1']
    #allocation4 [shape = 's32[2]{0}', space=sflag, size = 0x8, scoped, tag = 'scoped memory for tpu_custom_call.1']
    #allocation5 [shape = 'u8[262144]{0}', space=vmem, size = 0x40000, scoped, tag = 'input window, operand 1, single buffered']
    #allocation6 [shape = 's32[1]{0}', space=sflag, size = 0x4, scoped, tag = 'scoped memory for tpu_custom_call.1']
    #allocation7 [shape = 'u8[131072]{0}', space=vmem, size = 0x20000, scoped, tag = 'input window, operand 2, single buffered']
    #allocation8 [shape = 'u8[262144]{0}', space=vmem, size = 0x40000, scoped, tag = 'output window, operand 0']
    %8 = vsyncpa [#allocation3], 0
    %s9 = scalar_lea.sflag [#allocation3], 1
    %10 = vsyncpa %s9, 0
    %11 = vsyncpa [#allocation6], 0
    %12 = vsyncpa [#allocation4], 0
    %s13 = scalar_lea.sflag [#allocation4], 1
    %14 = vsyncpa %s13, 0
    loop: start=0, step=1, limit=4
    $region2: #{tpu_custom_call.1} parent=1 // loop_pre_header
      _
    $region3: #{tpu_custom_call.1} parent=1 // loop_header
      %s16 = sphi 0, %s20
      %p17 = scmp.ge.s32.totalorder %s16, 4
      %s26 = sphi 0, %s28
      %s29 = sphi 0, %s26
      %s30 = sphi 0, %s29
      %s46 = sphi 0, %s30
      %s50 = sphi 0, %s50
      %s52 = sphi 0, %s50
      %s53 = sphi 0, %s52
      %s67 = sphi 0, %s53
      %s71 = sphi 0, %s71
      %s73 = sphi 0, %s71
      %s74 = sphi 0, %s73
      %s88 = sphi 0, %s74
      %s94 = sphi 0, %s96
      %s97 = sphi 0, %s94
      %s98 = sphi 0, %s97
      %s114 = sphi 0, %s98
    $region4: #{tpu_custom_call.1} parent=1 // loop_header_branch
      %19 = sbr.rel (%p17) target = $region8
    $region5: #{tpu_custom_call.1} parent=1 // loop_body
      %s21 = ssub.s32 %s16, 1
      %s22 = ssub.s32 %s16, 2
      %s23 = sadd.s32 %s16, 1
      %s24 = ssub.s32 %s16, %s23
      %p25 = scmp.eq.s32.totalorder %s24, 0
      %s27 = sadd.s32 %s26, 1
      %s28 = scalar_select %p25, %s26, %s27
      %p31 = pneg %p25
      %p32 = scmp.eq.s32.totalorder %s16, 1
      %p33 = por %p31, %p32
      %p34 = scmp.ne.s32.totalorder %s26, %s29
      %p35 = scmp.eq.s32.totalorder %s16, 0
      %p36 = por %p34, %p35
      %p37 = scmp.ne.s32.totalorder %s26, %s29
      %p38 = scmp.eq.s32.totalorder %s21, 1
      %p39 = por %p37, %p38
      %p40 = scmp.ne.s32.totalorder %s29, %s30
      %p41 = scmp.eq.s32.totalorder %s21, 0
      %p42 = por %p40, %p41
      %p43 = scmp.ne.s32.totalorder %s29, %s30
      %p44 = scmp.eq.s32.totalorder %s22, 1
      %p45 = por %p43, %p44
      %p47 = scmp.ne.s32.totalorder %s30, %s46
      %p48 = scmp.eq.s32.totalorder %s22, 0
      %p49 = por %p47, %p48
      %s51 = sadd.s32 %s50, 1
      %p54 = scmp.eq.s32.totalorder %s16, 1
      %p55 = scmp.ne.s32.totalorder %s50, %s52
      %p56 = scmp.eq.s32.totalorder %s16, 0
      %p57 = por %p55, %p56
      %p58 = scmp.ne.s32.totalorder %s50, %s52
      %p59 = scmp.eq.s32.totalorder %s21, 1
      %p60 = por %p58, %p59
      %p61 = scmp.ne.s32.totalorder %s52, %s53
      %p62 = scmp.eq.s32.totalorder %s21, 0
      %p63 = por %p61, %p62
      %p64 = scmp.ne.s32.totalorder %s52, %s53
      %p65 = scmp.eq.s32.totalorder %s22, 1
      %p66 = por %p64, %p65
      %p68 = scmp.ne.s32.totalorder %s53, %s67
      %p69 = scmp.eq.s32.totalorder %s22, 0
      %p70 = por %p68, %p69
      %s72 = sadd.s32 %s71, 1
      %p75 = scmp.eq.s32.totalorder %s16, 1
      %p76 = scmp.ne.s32.totalorder %s71, %s73
      %p77 = scmp.eq.s32.totalorder %s16, 0
      %p78 = por %p76, %p77
      %p79 = scmp.ne.s32.totalorder %s71, %s73
      %p80 = scmp.eq.s32.totalorder %s21, 1
      %p81 = por %p79, %p80
      %p82 = scmp.ne.s32.totalorder %s73, %s74
      %p83 = scmp.eq.s32.totalorder %s21, 0
      %p84 = por %p82, %p83
      %p85 = scmp.ne.s32.totalorder %s73, %s74
      %p86 = scmp.eq.s32.totalorder %s22, 1
      %p87 = por %p85, %p86
      %p89 = scmp.ne.s32.totalorder %s74, %s88
      %p90 = scmp.eq.s32.totalorder %s22, 0
      %p91 = por %p89, %p90
      %s92 = ssub.s32 %s16, %s23
      %p93 = scmp.eq.s32.totalorder %s92, 0
      %s95 = sadd.s32 %s94, 1
      %s96 = scalar_select %p93, %s94, %s95
      %p99 = pneg %p93
      %p100 = scmp.eq.s32.totalorder %s16, 1
      %p101 = por %p99, %p100
      %p102 = scmp.ne.s32.totalorder %s94, %s97
      %p103 = scmp.eq.s32.totalorder %s16, 0
      %p104 = por %p102, %p103
      %p105 = scmp.ne.s32.totalorder %s94, %s97
      %p106 = scmp.eq.s32.totalorder %s21, 1
      %p107 = por %p105, %p106
      %p108 = scmp.ne.s32.totalorder %s97, %s98
      %p109 = scmp.eq.s32.totalorder %s21, 0
      %p110 = por %p108, %p109
      %p111 = scmp.ne.s32.totalorder %s97, %s98
      %p112 = scmp.eq.s32.totalorder %s22, 1
      %p113 = por %p111, %p112
      %p115 = scmp.ne.s32.totalorder %s98, %s114
      %p116 = scmp.eq.s32.totalorder %s22, 0
      %p117 = por %p115, %p116
      %p118 = scmp.le.s32.totalorder 1, %s16
      %p119 = scmp.lt.s32.totalorder %s16, 3
      %p120 = pnand %p118, %p119
      %p121 = pneg %p120
      // Predicated region
      $region9: #{tpu_custom_call.1} parent=5 // pred_check
        _
      $region10: #{tpu_custom_call.1} parent=5 // pred_check_branch
        %123 = sbr.rel (%p120) target = $region12
      $region11: #{tpu_custom_call.1} parent=5 // pred_region
        %s124 = ssub.s32 %s16, 1
        // Predicated region
        $region13: #{tpu_custom_call.1} parent=11 // pred_check
          %p125 = pneg %p63
        $region14: #{tpu_custom_call.1} parent=11 // pred_check_branch
          %127 = sbr.rel (%p125) target = $region16
        $region15: #{tpu_custom_call.1} parent=11 // pred_region
          %s129 = ssub.s32 8192, 8192
          %130 = vsyncadd [#allocation6], %s129
          %s131 = sshll.u32 [#allocation5], 4
          %s132 = int_to_ptr.vmem [resolvable:$true] %s131
          %137 = dma.hbm_to_vmem [thread:$0]  %s1, 8192, %s132, [#allocation6], 256, 256, 16
        $region16: #{tpu_custom_call.1} parent=11 // pred_fallthru
          _
        // Predicated region
        $region17: #{tpu_custom_call.1} parent=11 // pred_check
          %p138 = pneg %p84
        $region18: #{tpu_custom_call.1} parent=11 // pred_check_branch
          %140 = sbr.rel (%p138) target = $region20
        $region19: #{tpu_custom_call.1} parent=11 // pred_region
          %s142 = ssub.s32 4096, 4096
          %143 = vsyncadd [#allocation6], %s142
          %s144 = sshll.u32 [#allocation7], 4
          %s145 = int_to_ptr.vmem [resolvable:$true] %s144
          %150 = dma.hbm_to_vmem [thread:$0]  %s2, 4096, %s145, [#allocation6], 128, 128, 8
        $region20: #{tpu_custom_call.1} parent=11 // pred_fallthru
          _
      $region12: #{tpu_custom_call.1} parent=5 // pred_fallthru
        _
      %p151 = scmp.lt.s32.totalorder %s16, 2
      // Predicated region
      $region21: #{tpu_custom_call.1} parent=5 // pred_check
        %p152 = pneg %p151
      $region22: #{tpu_custom_call.1} parent=5 // pred_check_branch
        %154 = sbr.rel (%p152) target = $region24
      $region23: #{tpu_custom_call.1} parent=5 // pred_region
        // Predicated region
        $region25: #{tpu_custom_call.1} parent=23 // pred_check
          %p155 = pneg %p36
        $region26: #{tpu_custom_call.1} parent=23 // pred_check_branch
          %157 = sbr.rel (%p155) target = $region28
        $region27: #{tpu_custom_call.1} parent=23 // pred_region
          %s158 = sand.u32 %s26, 1
          %s159 = scalar_lea.sflag [#allocation3], %s158
          %s160 = sand.u32 %s26, 1
          %s161 = smul.addr %s160, 512
          %s162 = scalar_lea.vmem [#allocation2], %s161
          %s163 = smul.u32 32, %s16
          %s165 = ssub.s32 8192, 8192
          %166 = vsyncadd %s159, %s165
          %s167 = smul.addr %s163, 2
          %s168 = smul.addr %s167, 128
          %s169 = scalar_lea.hbm %s0, %s168
          %s170 = sshll.u32 %s162, 4
          %s171 = int_to_ptr.vmem [resolvable:$true] %s170
          %176 = dma.hbm_to_vmem [thread:$0]  %s169, 8192, %s171, %s159, 256, 256, 16
        $region28: #{tpu_custom_call.1} parent=23 // pred_fallthru
          _
      $region24: #{tpu_custom_call.1} parent=5 // pred_fallthru
        _
      %p177 = scmp.le.s32.totalorder 1, %s16
      %p178 = scmp.lt.s32.totalorder %s16, 3
      %p179 = pnand %p177, %p178
      %p180 = pneg %p179
      // Predicated region
      $region29: #{tpu_custom_call.1} parent=5 // pred_check
        _
      $region30: #{tpu_custom_call.1} parent=5 // pred_check_branch
        %182 = sbr.rel (%p179) target = $region32
      $region31: #{tpu_custom_call.1} parent=5 // pred_region
        %s183 = ssub.s32 %s16, 1
        %s184 = sand.u32 %s29, 1
        %s185 = scalar_lea.sflag [#allocation3], %s184
        %s186 = sand.u32 %s29, 1
        %s187 = smul.addr %s186, 512
        %s188 = scalar_lea.vmem [#allocation2], %s187
        // Predicated region
        $region33: #{tpu_custom_call.1} parent=31 // pred_check
          %p189 = pneg %p42
        $region34: #{tpu_custom_call.1} parent=31 // pred_check_branch
          %191 = sbr.rel (%p189) target = $region36
        $region35: #{tpu_custom_call.1} parent=31 // pred_region
          %192 = dma.done %s185, 8192
        $region36: #{tpu_custom_call.1} parent=31 // pred_fallthru
          _
        // Predicated region
        $region37: #{tpu_custom_call.1} parent=31 // pred_check
          %p193 = pneg %p63
        $region38: #{tpu_custom_call.1} parent=31 // pred_check_branch
          %195 = sbr.rel (%p193) target = $region40
        $region39: #{tpu_custom_call.1} parent=31 // pred_region
          %196 = dma.done [#allocation6], 8192
        $region40: #{tpu_custom_call.1} parent=31 // pred_fallthru
          _
        // Predicated region
        $region41: #{tpu_custom_call.1} parent=31 // pred_check
          %p197 = pneg %p84
        $region42: #{tpu_custom_call.1} parent=31 // pred_check_branch
          %199 = sbr.rel (%p197) target = $region44
        $region43: #{tpu_custom_call.1} parent=31 // pred_region
          %200 = dma.done [#allocation6], 4096
        $region44: #{tpu_custom_call.1} parent=31 // pred_fallthru
          _
        %s201 = sand.u32 %s29, 1
        %s202 = scalar_lea.sflag [#allocation3], %s201
        %s203 = sand.u32 %s29, 1
        %s204 = smul.addr %s203, 512
        %s205 = scalar_lea.vmem [#allocation2], %s204
        %p206 = pneg %p42
        %p207 = pneg %p39
        %p208 = pneg %p63
        %p209 = pneg %p60
        %p210 = pneg %p84
        %p211 = pneg %p81
        %p212 = pneg %p110
        %p213 = pneg %p107
        %s214 = sand.u32 %s97, 1
        %s215 = scalar_lea.sflag [#allocation4], %s214
        %s216 = sand.u32 %s97, 1
        %s217 = smul.addr %s216, 256
        %s218 = scalar_lea.vmem [#allocation8], %s217
        %s219 = smul.u32 32, %s21
        %s220 = smul.u32 32, %s21
        %v221 = vld [vmem:[%s188] sm:$0xff]
        %v222 = vld [vmem:[%s188 + $0x8] sm:$0xff]
        %v223 = vld [vmem:[%s188 + $0x10] sm:$0xff]
        %v224 = vld [vmem:[%s188 + $0x18] sm:$0xff]
        %v225 = vld [vmem:[%s188 + $0x20] sm:$0xff]
        %v226 = vld [vmem:[%s188 + $0x28] sm:$0xff]
        %v227 = vld [vmem:[%s188 + $0x30] sm:$0xff]
        %v228 = vld [vmem:[%s188 + $0x38] sm:$0xff]
        %v229 = vld [vmem:[%s188 + $0x40] sm:$0xff]
        %v230 = vld [vmem:[%s188 + $0x48] sm:$0xff]
        %v231 = vld [vmem:[%s188 + $0x50] sm:$0xff]
        %v232 = vld [vmem:[%s188 + $0x58] sm:$0xff]
        %v233 = vld [vmem:[%s188 + $0x60] sm:$0xff]
        %v234 = vld [vmem:[%s188 + $0x68] sm:$0xff]
        %v235 = vld [vmem:[%s188 + $0x70] sm:$0xff]
        %v236 = vld [vmem:[%s188 + $0x78] sm:$0xff]
        %v237 = vld [vmem:[%s188 + $0x80] sm:$0xff]
        %v238 = vld [vmem:[%s188 + $0x88] sm:$0xff]
        %v239 = vld [vmem:[%s188 + $0x90] sm:$0xff]
        %v240 = vld [vmem:[%s188 + $0x98] sm:$0xff]
        %v241 = vld [vmem:[%s188 + $0xa0] sm:$0xff]
        %v242 = vld [vmem:[%s188 + $0xa8] sm:$0xff]
        %v243 = vld [vmem:[%s188 + $0xb0] sm:$0xff]
        %v244 = vld [vmem:[%s188 + $0xb8] sm:$0xff]
        %v245 = vld [vmem:[%s188 + $0xc0] sm:$0xff]
        %v246 = vld [vmem:[%s188 + $0xc8] sm:$0xff]
        %v247 = vld [vmem:[%s188 + $0xd0] sm:$0xff]
        %v248 = vld [vmem:[%s188 + $0xd8] sm:$0xff]
        %v249 = vld [vmem:[%s188 + $0xe0] sm:$0xff]
        %v250 = vld [vmem:[%s188 + $0xe8] sm:$0xff]
        %v251 = vld [vmem:[%s188 + $0xf0] sm:$0xff]
        %v252 = vld [vmem:[%s188 + $0xf8] sm:$0xff]
        %v253 = vld [vmem:[%s188 + $0x100] sm:$0xff]
        %v254 = vld [vmem:[%s188 + $0x108] sm:$0xff]
        %v255 = vld [vmem:[%s188 + $0x110] sm:$0xff]
        %v256 = vld [vmem:[%s188 + $0x118] sm:$0xff]
        %v257 = vld [vmem:[%s188 + $0x120] sm:$0xff]
        %v258 = vld [vmem:[%s188 + $0x128] sm:$0xff]
        %v259 = vld [vmem:[%s188 + $0x130] sm:$0xff]
        %v260 = vld [vmem:[%s188 + $0x138] sm:$0xff]
        %v261 = vld [vmem:[%s188 + $0x140] sm:$0xff]
        %v262 = vld [vmem:[%s188 + $0x148] sm:$0xff]
        %v263 = vld [vmem:[%s188 + $0x150] sm:$0xff]
        %v264 = vld [vmem:[%s188 + $0x158] sm:$0xff]
        %v265 = vld [vmem:[%s188 + $0x160] sm:$0xff]
        %v266 = vld [vmem:[%s188 + $0x168] sm:$0xff]
        %v267 = vld [vmem:[%s188 + $0x170] sm:$0xff]
        %v268 = vld [vmem:[%s188 + $0x178] sm:$0xff]
        %v269 = vld [vmem:[%s188 + $0x180] sm:$0xff]
        %v270 = vld [vmem:[%s188 + $0x188] sm:$0xff]
        %v271 = vld [vmem:[%s188 + $0x190] sm:$0xff]
        %v272 = vld [vmem:[%s188 + $0x198] sm:$0xff]
        %v273 = vld [vmem:[%s188 + $0x1a0] sm:$0xff]
        %v274 = vld [vmem:[%s188 + $0x1a8] sm:$0xff]
        %v275 = vld [vmem:[%s188 + $0x1b0] sm:$0xff]
        %v276 = vld [vmem:[%s188 + $0x1b8] sm:$0xff]
        %v277 = vld [vmem:[%s188 + $0x1c0] sm:$0xff]
        %v278 = vld [vmem:[%s188 + $0x1c8] sm:$0xff]
        %v279 = vld [vmem:[%s188 + $0x1d0] sm:$0xff]
        %v280 = vld [vmem:[%s188 + $0x1d8] sm:$0xff]
        %v281 = vld [vmem:[%s188 + $0x1e0] sm:$0xff]
        %v282 = vld [vmem:[%s188 + $0x1e8] sm:$0xff]
        %v283 = vld [vmem:[%s188 + $0x1f0] sm:$0xff]
        %v284 = vld [vmem:[%s188 + $0x1f8] sm:$0xff]
        %v285 = vld [vmem:[#allocation5] sm:$0xff]
        %v286 = vld [vmem:[#allocation5 + $0x8] sm:$0xff]
        %v287 = vld [vmem:[#allocation5 + $0x10] sm:$0xff]
        %v288 = vld [vmem:[#allocation5 + $0x18] sm:$0xff]
        %v289 = vld [vmem:[#allocation5 + $0x20] sm:$0xff]
        %v290 = vld [vmem:[#allocation5 + $0x28] sm:$0xff]
        %v291 = vld [vmem:[#allocation5 + $0x30] sm:$0xff]
        %v292 = vld [vmem:[#allocation5 + $0x38] sm:$0xff]
        %v293 = vld [vmem:[#allocation5 + $0x40] sm:$0xff]
        %v294 = vld [vmem:[#allocation5 + $0x48] sm:$0xff]
        %v295 = vld [vmem:[#allocation5 + $0x50] sm:$0xff]
        %v296 = vld [vmem:[#allocation5 + $0x58] sm:$0xff]
        %v297 = vld [vmem:[#allocation5 + $0x60] sm:$0xff]
        %v298 = vld [vmem:[#allocation5 + $0x68] sm:$0xff]
        %v299 = vld [vmem:[#allocation5 + $0x70] sm:$0xff]
        %v300 = vld [vmem:[#allocation5 + $0x78] sm:$0xff]
        %v301 = vld [vmem:[#allocation5 + $0x80] sm:$0xff]
        %v302 = vld [vmem:[#allocation5 + $0x88] sm:$0xff]
        %v303 = vld [vmem:[#allocation5 + $0x90] sm:$0xff]
        %v304 = vld [vmem:[#allocation5 + $0x98] sm:$0xff]
        %v305 = vld [vmem:[#allocation5 + $0xa0] sm:$0xff]
        %v306 = vld [vmem:[#allocation5 + $0xa8] sm:$0xff]
        %v307 = vld [vmem:[#allocation5 + $0xb0] sm:$0xff]
        %v308 = vld [vmem:[#allocation5 + $0xb8] sm:$0xff]
        %v309 = vld [vmem:[#allocation5 + $0xc0] sm:$0xff]
        %v310 = vld [vmem:[#allocation5 + $0xc8] sm:$0xff]
        %v311 = vld [vmem:[#allocation5 + $0xd0] sm:$0xff]
        %v312 = vld [vmem:[#allocation5 + $0xd8] sm:$0xff]
        %v313 = vld [vmem:[#allocation5 + $0xe0] sm:$0xff]
        %v314 = vld [vmem:[#allocation5 + $0xe8] sm:$0xff]
        %v315 = vld [vmem:[#allocation5 + $0xf0] sm:$0xff]
        %v316 = vld [vmem:[#allocation5 + $0xf8] sm:$0xff]
        %v317 = vld [vmem:[#allocation5 + $0x100] sm:$0xff]
        %v318 = vld [vmem:[#allocation5 + $0x108] sm:$0xff]
        %v319 = vld [vmem:[#allocation5 + $0x110] sm:$0xff]
        %v320 = vld [vmem:[#allocation5 + $0x118] sm:$0xff]
        %v321 = vld [vmem:[#allocation5 + $0x120] sm:$0xff]
        %v322 = vld [vmem:[#allocation5 + $0x128] sm:$0xff]
        %v323 = vld [vmem:[#allocation5 + $0x130] sm:$0xff]
        %v324 = vld [vmem:[#allocation5 + $0x138] sm:$0xff]
        %v325 = vld [vmem:[#allocation5 + $0x140] sm:$0xff]
        %v326 = vld [vmem:[#allocation5 + $0x148] sm:$0xff]
        %v327 = vld [vmem:[#allocation5 + $0x150] sm:$0xff]
        %v328 = vld [vmem:[#allocation5 + $0x158] sm:$0xff]
        %v329 = vld [vmem:[#allocation5 + $0x160] sm:$0xff]
        %v330 = vld [vmem:[#allocation5 + $0x168] sm:$0xff]
        %v331 = vld [vmem:[#allocation5 + $0x170] sm:$0xff]
        %v332 = vld [vmem:[#allocation5 + $0x178] sm:$0xff]
        %v333 = vld [vmem:[#allocation5 + $0x180] sm:$0xff]
        %v334 = vld [vmem:[#allocation5 + $0x188] sm:$0xff]
        %v335 = vld [vmem:[#allocation5 + $0x190] sm:$0xff]
        %v336 = vld [vmem:[#allocation5 + $0x198] sm:$0xff]
        %v337 = vld [vmem:[#allocation5 + $0x1a0] sm:$0xff]
        %v338 = vld [vmem:[#allocation5 + $0x1a8] sm:$0xff]
        %v339 = vld [vmem:[#allocation5 + $0x1b0] sm:$0xff]
        %v340 = vld [vmem:[#allocation5 + $0x1b8] sm:$0xff]
        %v341 = vld [vmem:[#allocation5 + $0x1c0] sm:$0xff]
        %v342 = vld [vmem:[#allocation5 + $0x1c8] sm:$0xff]
        %v343 = vld [vmem:[#allocation5 + $0x1d0] sm:$0xff]
        %v344 = vld [vmem:[#allocation5 + $0x1d8] sm:$0xff]
        %v345 = vld [vmem:[#allocation5 + $0x1e0] sm:$0xff]
        %v346 = vld [vmem:[#allocation5 + $0x1e8] sm:$0xff]
        %v347 = vld [vmem:[#allocation5 + $0x1f0] sm:$0xff]
        %v348 = vld [vmem:[#allocation5 + $0x1f8] sm:$0xff]
        %349 = vmatprep.subr.mxu0 %v286
        %350 = vmatpush1.msra.mxu0 %v285
        %351 = vmatprep.subr.mxu0 %v288
        %352 = vmatpush1.msra.mxu0 %v287
        %353 = vmatprep.subr.mxu0 %v290
        %354 = vmatpush1.msra.mxu0 %v289
        %355 = vmatprep.subr.mxu0 %v292
        %356 = vmatpush1.msra.mxu0 %v291
        %357 = vmatprep.subr.mxu0 %v294
        %358 = vmatpush1.msra.mxu0 %v293
        %359 = vmatprep.subr.mxu0 %v296
        %360 = vmatpush1.msra.mxu0 %v295
        %361 = vmatprep.subr.mxu0 %v298
        %362 = vmatpush1.msra.mxu0 %v297
        %363 = vmatprep.subr.mxu0 %v300
        %364 = vmatpush1.msra.mxu0 %v299
        %365 = vmatprep.subr.mxu0 %v302
        %366 = vmatpush1.msra.mxu0 %v301
        %367 = vmatprep.subr.mxu0 %v304
        %368 = vmatpush1.msra.mxu0 %v303
        %369 = vmatprep.subr.mxu0 %v306
        %370 = vmatpush1.msra.mxu0 %v305
        %371 = vmatprep.subr.mxu0 %v308
        %372 = vmatpush1.msra.mxu0 %v307
        %373 = vmatprep.subr.mxu0 %v310
        %374 = vmatpush1.msra.mxu0 %v309
        %375 = vmatprep.subr.mxu0 %v312
        %376 = vmatpush1.msra.mxu0 %v311
        %377 = vmatprep.subr.mxu0 %v314
        %378 = vmatpush1.msra.mxu0 %v313
        %379 = vmatprep.subr.mxu0 %v316
        %380 = vmatpush1.msra.mxu0 %v315
        %381 = vmatprep.subr.mxu0 %v318
        %382 = vmatpush1.msra.mxu0 %v317
        %383 = vmatprep.subr.mxu0 %v320
        %384 = vmatpush1.msra.mxu0 %v319
        %385 = vmatprep.subr.mxu0 %v322
        %386 = vmatpush1.msra.mxu0 %v321
        %387 = vmatprep.subr.mxu0 %v324
        %388 = vmatpush1.msra.mxu0 %v323
        %389 = vmatprep.subr.mxu0 %v326
        %390 = vmatpush1.msra.mxu0 %v325
        %391 = vmatprep.subr.mxu0 %v328
        %392 = vmatpush1.msra.mxu0 %v327
        %393 = vmatprep.subr.mxu0 %v330
        %394 = vmatpush1.msra.mxu0 %v329
        %395 = vmatprep.subr.mxu0 %v332
        %396 = vmatpush1.msra.mxu0 %v331
        %397 = vmatprep.subr.mxu0 %v334
        %398 = vmatpush1.msra.mxu0 %v333
        %399 = vmatprep.subr.mxu0 %v336
        %400 = vmatpush1.msra.mxu0 %v335
        %401 = vmatprep.subr.mxu0 %v338
        %402 = vmatpush1.msra.mxu0 %v337
        %403 = vmatprep.subr.mxu0 %v340
        %404 = vmatpush1.msra.mxu0 %v339
        %405 = vmatprep.subr.mxu0 %v342
        %406 = vmatpush1.msra.mxu0 %v341
        %407 = vmatprep.subr.mxu0 %v344
        %408 = vmatpush1.msra.mxu0 %v343
        %409 = vmatprep.subr.mxu0 %v346
        %410 = vmatpush1.msra.mxu0 %v345
        %411 = vmatprep.subr.mxu0 %v348
        %412 = vmatpush1.msra.mxu0 %v347
        %413 = vmatprep.mubr.f32.mxu0 %v222
        %414 = vmatmul.mubr.f32.gmra.mrb[0].mxu0 %v221
        %v415 = vpop.f32.mrb[0].mxu0
        %v416 = vadd.f32 0.0, %v415
        %v417 = vpop.f32.mrb[0].mxu0
        %v418 = vadd.f32 0.0, %v417
        %419 = vmatprep.mubr.f32.mxu0 %v224
        %420 = vmatmul.mubr.f32.gmra.mrb[0].mxu0 %v223
        %v421 = vpop.f32.mrb[0].mxu0
        %v422 = vadd.f32 0.0, %v421
        %v423 = vpop.f32.mrb[0].mxu0
        %v424 = vadd.f32 0.0, %v423
        %425 = vmatprep.mubr.f32.mxu0 %v226
        %426 = vmatmul.mubr.f32.gmra.mrb[0].mxu0 %v225
        %v427 = vpop.f32.mrb[0].mxu0
        %v428 = vadd.f32 0.0, %v427
        %v429 = vpop.f32.mrb[0].mxu0
        %v430 = vadd.f32 0.0, %v429
        %431 = vmatprep.mubr.f32.mxu0 %v228
        %432 = vmatmul.mubr.f32.gmra.mrb[0].mxu0 %v227
        %v433 = vpop.f32.mrb[0].mxu0
        %v434 = vadd.f32 0.0, %v433
        %v435 = vpop.f32.mrb[0].mxu0
        %v436 = vadd.f32 0.0, %v435
        %437 = vmatprep.mubr.f32.mxu0 %v230
        %438 = vmatmul.mubr.f32.gmra.mrb[0].mxu0 %v229
        %v439 = vpop.f32.mrb[0].mxu0
        %v440 = vadd.f32 0.0, %v439
        %v441 = vpop.f32.mrb[0].mxu0
        %v442 = vadd.f32 0.0, %v441
        %443 = vmatprep.mubr.f32.mxu0 %v232
        %444 = vmatmul.mubr.f32.gmra.mrb[0].mxu0 %v231
        %v445 = vpop.f32.mrb[0].mxu0
        %v446 = vadd.f32 0.0, %v445
        %v447 = vpop.f32.mrb[0].mxu0
        %v448 = vadd.f32 0.0, %v447
        %449 = vmatprep.mubr.f32.mxu0 %v234
        %450 = vmatmul.mubr.f32.gmra.mrb[0].mxu0 %v233
        %v451 = vpop.f32.mrb[0].mxu0
        %v452 = vadd.f32 0.0, %v451
        %v453 = vpop.f32.mrb[0].mxu0
        %v454 = vadd.f32 0.0, %v453
        %455 = vmatprep.mubr.f32.mxu0 %v236
        %456 = vmatmul.mubr.f32.gmra.mrb[0].mxu0 %v235
        %v457 = vpop.f32.mrb[0].mxu0
        %v458 = vadd.f32 0.0, %v457
        %v459 = vpop.f32.mrb[0].mxu0
        %v460 = vadd.f32 0.0, %v459
        %461 = vmatprep.mubr.f32.mxu0 %v238
        %462 = vmatmul.mubr.f32.gmra.mrb[0].mxu0 %v237
        %v463 = vpop.f32.mrb[0].mxu0
        %v464 = vadd.f32 0.0, %v463
        %v465 = vpop.f32.mrb[0].mxu0
        %v466 = vadd.f32 0.0, %v465
        %467 = vmatprep.mubr.f32.mxu0 %v240
        %468 = vmatmul.mubr.f32.gmra.mrb[0].mxu0 %v239
        %v469 = vpop.f32.mrb[0].mxu0
        %v470 = vadd.f32 0.0, %v469
        %v471 = vpop.f32.mrb[0].mxu0
        %v472 = vadd.f32 0.0, %v471
        %473 = vmatprep.mubr.f32.mxu0 %v242
        %474 = vmatmul.mubr.f32.gmra.mrb[0].mxu0 %v241
        %v475 = vpop.f32.mrb[0].mxu0
        %v476 = vadd.f32 0.0, %v475
        %v477 = vpop.f32.mrb[0].mxu0
        %v478 = vadd.f32 0.0, %v477
        %479 = vmatprep.mubr.f32.mxu0 %v244
        %480 = vmatmul.mubr.f32.gmra.mrb[0].mxu0 %v243
        %v481 = vpop.f32.mrb[0].mxu0
        %v482 = vadd.f32 0.0, %v481
        %v483 = vpop.f32.mrb[0].mxu0
        %v484 = vadd.f32 0.0, %v483
        %485 = vmatprep.mubr.f32.mxu0 %v246
        %486 = vmatmul.mubr.f32.gmra.mrb[0].mxu0 %v245
        %v487 = vpop.f32.mrb[0].mxu0
        %v488 = vadd.f32 0.0, %v487
        %v489 = vpop.f32.mrb[0].mxu0
        %v490 = vadd.f32 0.0, %v489
        %491 = vmatprep.mubr.f32.mxu0 %v248
        %492 = vmatmul.mubr.f32.gmra.mrb[0].mxu0 %v247
        %v493 = vpop.f32.mrb[0].mxu0
        %v494 = vadd.f32 0.0, %v493
        %v495 = vpop.f32.mrb[0].mxu0
        %v496 = vadd.f32 0.0, %v495
        %497 = vmatprep.mubr.f32.mxu0 %v250
        %498 = vmatmul.mubr.f32.gmra.mrb[0].mxu0 %v249
        %v499 = vpop.f32.mrb[0].mxu0
        %v500 = vadd.f32 0.0, %v499
        %v501 = vpop.f32.mrb[0].mxu0
        %v502 = vadd.f32 0.0, %v501
        %503 = vmatprep.mubr.f32.mxu0 %v252
        %504 = vmatmul.mubr.f32.gmra.mrb[0].mxu0 %v251
        %v505 = vpop.f32.mrb[0].mxu0
        %v506 = vadd.f32 0.0, %v505
        %v507 = vpop.f32.mrb[0].mxu0
        %v508 = vadd.f32 0.0, %v507
        %509 = vmatprep.mubr.f32.mxu0 %v254
        %510 = vmatmul.mubr.f32.gmra.mrb[0].mxu0 %v253
        %v511 = vpop.f32.mrb[0].mxu0
        %v512 = vadd.f32 0.0, %v511
        %v513 = vpop.f32.mrb[0].mxu0
        %v514 = vadd.f32 0.0, %v513
        %515 = vmatprep.mubr.f32.mxu0 %v256
        %516 = vmatmul.mubr.f32.gmra.mrb[0].mxu0 %v255
        %v517 = vpop.f32.mrb[0].mxu0
        %v518 = vadd.f32 0.0, %v517
        %v519 = vpop.f32.mrb[0].mxu0
        %v520 = vadd.f32 0.0, %v519
        %521 = vmatprep.mubr.f32.mxu0 %v258
        %522 = vmatmul.mubr.f32.gmra.mrb[0].mxu0 %v257
        %v523 = vpop.f32.mrb[0].mxu0
        %v524 = vadd.f32 0.0, %v523
        %v525 = vpop.f32.mrb[0].mxu0
        %v526 = vadd.f32 0.0, %v525
        %527 = vmatprep.mubr.f32.mxu0 %v260
        %528 = vmatmul.mubr.f32.gmra.mrb[0].mxu0 %v259
        %v529 = vpop.f32.mrb[0].mxu0
        %v530 = vadd.f32 0.0, %v529
        %v531 = vpop.f32.mrb[0].mxu0
        %v532 = vadd.f32 0.0, %v531
        %533 = vmatprep.mubr.f32.mxu0 %v262
        %534 = vmatmul.mubr.f32.gmra.mrb[0].mxu0 %v261
        %v535 = vpop.f32.mrb[0].mxu0
        %v536 = vadd.f32 0.0, %v535
        %v537 = vpop.f32.mrb[0].mxu0
        %v538 = vadd.f32 0.0, %v537
        %539 = vmatprep.mubr.f32.mxu0 %v264
        %540 = vmatmul.mubr.f32.gmra.mrb[0].mxu0 %v263
        %v541 = vpop.f32.mrb[0].mxu0
        %v542 = vadd.f32 0.0, %v541
        %v543 = vpop.f32.mrb[0].mxu0
        %v544 = vadd.f32 0.0, %v543
        %545 = vmatprep.mubr.f32.mxu0 %v266
        %546 = vmatmul.mubr.f32.gmra.mrb[0].mxu0 %v265
        %v547 = vpop.f32.mrb[0].mxu0
        %v548 = vadd.f32 0.0, %v547
        %v549 = vpop.f32.mrb[0].mxu0
        %v550 = vadd.f32 0.0, %v549
        %551 = vmatprep.mubr.f32.mxu0 %v268
        %552 = vmatmul.mubr.f32.gmra.mrb[0].mxu0 %v267
        %v553 = vpop.f32.mrb[0].mxu0
        %v554 = vadd.f32 0.0, %v553
        %v555 = vpop.f32.mrb[0].mxu0
        %v556 = vadd.f32 0.0, %v555
        %557 = vmatprep.mubr.f32.mxu0 %v270
        %558 = vmatmul.mubr.f32.gmra.mrb[0].mxu0 %v269
        %v559 = vpop.f32.mrb[0].mxu0
        %v560 = vadd.f32 0.0, %v559
        %v561 = vpop.f32.mrb[0].mxu0
        %v562 = vadd.f32 0.0, %v561
        %563 = vmatprep.mubr.f32.mxu0 %v272
        %564 = vmatmul.mubr.f32.gmra.mrb[0].mxu0 %v271
        %v565 = vpop.f32.mrb[0].mxu0
        %v566 = vadd.f32 0.0, %v565
        %v567 = vpop.f32.mrb[0].mxu0
        %v568 = vadd.f32 0.0, %v567
        %569 = vmatprep.mubr.f32.mxu0 %v274
        %570 = vmatmul.mubr.f32.gmra.mrb[0].mxu0 %v273
        %v571 = vpop.f32.mrb[0].mxu0
        %v572 = vadd.f32 0.0, %v571
        %v573 = vpop.f32.mrb[0].mxu0
        %v574 = vadd.f32 0.0, %v573
        %575 = vmatprep.mubr.f32.mxu0 %v276
        %576 = vmatmul.mubr.f32.gmra.mrb[0].mxu0 %v275
        %v577 = vpop.f32.mrb[0].mxu0
        %v578 = vadd.f32 0.0, %v577
        %v579 = vpop.f32.mrb[0].mxu0
        %v580 = vadd.f32 0.0, %v579
        %581 = vmatprep.mubr.f32.mxu0 %v278
        %582 = vmatmul.mubr.f32.gmra.mrb[0].mxu0 %v277
        %v583 = vpop.f32.mrb[0].mxu0
        %v584 = vadd.f32 0.0, %v583
        %v585 = vpop.f32.mrb[0].mxu0
        %v586 = vadd.f32 0.0, %v585
        %587 = vmatprep.mubr.f32.mxu0 %v280
        %588 = vmatmul.mubr.f32.gmra.mrb[0].mxu0 %v279
        %v589 = vpop.f32.mrb[0].mxu0
        %v590 = vadd.f32 0.0, %v589
        %v591 = vpop.f32.mrb[0].mxu0
        %v592 = vadd.f32 0.0, %v591
        %593 = vmatprep.mubr.f32.mxu0 %v282
        %594 = vmatmul.mubr.f32.gmra.mrb[0].mxu0 %v281
        %v595 = vpop.f32.mrb[0].mxu0
        %v596 = vadd.f32 0.0, %v595
        %v597 = vpop.f32.mrb[0].mxu0
        %v598 = vadd.f32 0.0, %v597
        %599 = vmatprep.mubr.f32.mxu0 %v284
        %600 = vmatmul.mubr.f32.gmra.mrb[0].mxu0 %v283
        %v601 = vpop.f32.mrb[0].mxu0
        %v602 = vadd.f32 0.0, %v601
        %v603 = vpop.f32.mrb[0].mxu0
        %v604 = vadd.f32 0.0, %v603
        %605 = vdwg.mxu0
        %v606 = vmul.f32 %v221, %v416
        %v607 = vmul.f32 %v222, %v418
        %v608 = vmul.f32 %v223, %v422
        %v609 = vmul.f32 %v224, %v424
        %v610 = vmul.f32 %v225, %v428
        %v611 = vmul.f32 %v226, %v430
        %v612 = vmul.f32 %v227, %v434
        %v613 = vmul.f32 %v228, %v436
        %v614 = vmul.f32 %v229, %v440
        %v615 = vmul.f32 %v230, %v442
        %v616 = vmul.f32 %v231, %v446
        %v617 = vmul.f32 %v232, %v448
        %v618 = vmul.f32 %v233, %v452
        %v619 = vmul.f32 %v234, %v454
        %v620 = vmul.f32 %v235, %v458
        %v621 = vmul.f32 %v236, %v460
        %v622 = vmul.f32 %v237, %v464
        %v623 = vmul.f32 %v238, %v466
        %v624 = vmul.f32 %v239, %v470
        %v625 = vmul.f32 %v240, %v472
        %v626 = vmul.f32 %v241, %v476
        %v627 = vmul.f32 %v242, %v478
        %v628 = vmul.f32 %v243, %v482
        %v629 = vmul.f32 %v244, %v484
        %v630 = vmul.f32 %v245, %v488
        %v631 = vmul.f32 %v246, %v490
        %v632 = vmul.f32 %v247, %v494
        %v633 = vmul.f32 %v248, %v496
        %v634 = vmul.f32 %v249, %v500
        %v635 = vmul.f32 %v250, %v502
        %v636 = vmul.f32 %v251, %v506
        %v637 = vmul.f32 %v252, %v508
        %v638 = vmul.f32 %v253, %v512
        %v639 = vmul.f32 %v254, %v514
        %v640 = vmul.f32 %v255, %v518
        %v641 = vmul.f32 %v256, %v520
        %v642 = vmul.f32 %v257, %v524
        %v643 = vmul.f32 %v258, %v526
        %v644 = vmul.f32 %v259, %v530
        %v645 = vmul.f32 %v260, %v532
        %v646 = vmul.f32 %v261, %v536
        %v647 = vmul.f32 %v262, %v538
        %v648 = vmul.f32 %v263, %v542
        %v649 = vmul.f32 %v264, %v544
        %v650 = vmul.f32 %v265, %v548
        %v651 = vmul.f32 %v266, %v550
        %v652 = vmul.f32 %v267, %v554
        %v653 = vmul.f32 %v268, %v556
        %v654 = vmul.f32 %v269, %v560
        %v655 = vmul.f32 %v270, %v562
        %v656 = vmul.f32 %v271, %v566
        %v657 = vmul.f32 %v272, %v568
        %v658 = vmul.f32 %v273, %v572
        %v659 = vmul.f32 %v274, %v574
        %v660 = vmul.f32 %v275, %v578
        %v661 = vmul.f32 %v276, %v580
        %v662 = vmul.f32 %v277, %v584
        %v663 = vmul.f32 %v278, %v586
        %v664 = vmul.f32 %v279, %v590
        %v665 = vmul.f32 %v280, %v592
        %v666 = vmul.f32 %v281, %v596
        %v667 = vmul.f32 %v282, %v598
        %v668 = vmul.f32 %v283, %v602
        %v669 = vmul.f32 %v284, %v604
        %v670 = vld [vmem:[#allocation7] sm:$0xff]
        %v671 = vld [vmem:[#allocation7 + $0x8] sm:$0xff]
        %v672 = vld [vmem:[#allocation7 + $0x10] sm:$0xff]
        %v673 = vld [vmem:[#allocation7 + $0x18] sm:$0xff]
        %v674 = vld [vmem:[#allocation7 + $0x20] sm:$0xff]
        %v675 = vld [vmem:[#allocation7 + $0x28] sm:$0xff]
        %v676 = vld [vmem:[#allocation7 + $0x30] sm:$0xff]
        %v677 = vld [vmem:[#allocation7 + $0x38] sm:$0xff]
        %v678 = vld [vmem:[#allocation7 + $0x40] sm:$0xff]
        %v679 = vld [vmem:[#allocation7 + $0x48] sm:$0xff]
        %v680 = vld [vmem:[#allocation7 + $0x50] sm:$0xff]
        %v681 = vld [vmem:[#allocation7 + $0x58] sm:$0xff]
        %v682 = vld [vmem:[#allocation7 + $0x60] sm:$0xff]
        %v683 = vld [vmem:[#allocation7 + $0x68] sm:$0xff]
        %v684 = vld [vmem:[#allocation7 + $0x70] sm:$0xff]
        %v685 = vld [vmem:[#allocation7 + $0x78] sm:$0xff]
        %v686 = vld [vmem:[#allocation7 + $0x80] sm:$0xff]
        %v687 = vld [vmem:[#allocation7 + $0x88] sm:$0xff]
        %v688 = vld [vmem:[#allocation7 + $0x90] sm:$0xff]
        %v689 = vld [vmem:[#allocation7 + $0x98] sm:$0xff]
        %v690 = vld [vmem:[#allocation7 + $0xa0] sm:$0xff]
        %v691 = vld [vmem:[#allocation7 + $0xa8] sm:$0xff]
        %v692 = vld [vmem:[#allocation7 + $0xb0] sm:$0xff]
        %v693 = vld [vmem:[#allocation7 + $0xb8] sm:$0xff]
        %v694 = vld [vmem:[#allocation7 + $0xc0] sm:$0xff]
        %v695 = vld [vmem:[#allocation7 + $0xc8] sm:$0xff]
        %v696 = vld [vmem:[#allocation7 + $0xd0] sm:$0xff]
        %v697 = vld [vmem:[#allocation7 + $0xd8] sm:$0xff]
        %v698 = vld [vmem:[#allocation7 + $0xe0] sm:$0xff]
        %v699 = vld [vmem:[#allocation7 + $0xe8] sm:$0xff]
        %v700 = vld [vmem:[#allocation7 + $0xf0] sm:$0xff]
        %v701 = vld [vmem:[#allocation7 + $0xf8] sm:$0xff]
        %702 = vmatprep.subr.mxu0 0.0
        %703 = vmatpush1.msra.mxu0 %v670
        %704 = vmatprep.subr.mxu0 0.0
        %705 = vmatpush1.msra.mxu0 %v671
        %706 = vmatprep.subr.mxu0 0.0
        %707 = vmatpush1.msra.mxu0 %v672
        %708 = vmatprep.subr.mxu0 0.0
        %709 = vmatpush1.msra.mxu0 %v673
        %710 = vmatprep.subr.mxu0 0.0
        %711 = vmatpush1.msra.mxu0 %v674
        %712 = vmatprep.subr.mxu0 0.0
        %713 = vmatpush1.msra.mxu0 %v675
        %714 = vmatprep.subr.mxu0 0.0
        %715 = vmatpush1.msra.mxu0 %v676
        %716 = vmatprep.subr.mxu0 0.0
        %717 = vmatpush1.msra.mxu0 %v677
        %718 = vmatprep.subr.mxu0 0.0
        %719 = vmatpush1.msra.mxu0 %v678
        %720 = vmatprep.subr.mxu0 0.0
        %721 = vmatpush1.msra.mxu0 %v679
        %722 = vmatprep.subr.mxu0 0.0
        %723 = vmatpush1.msra.mxu0 %v680
        %724 = vmatprep.subr.mxu0 0.0
        %725 = vmatpush1.msra.mxu0 %v681
        %726 = vmatprep.subr.mxu0 0.0
        %727 = vmatpush1.msra.mxu0 %v682
        %728 = vmatprep.subr.mxu0 0.0
        %729 = vmatpush1.msra.mxu0 %v683
        %730 = vmatprep.subr.mxu0 0.0
        %731 = vmatpush1.msra.mxu0 %v684
        %732 = vmatprep.subr.mxu0 0.0
        %733 = vmatpush1.msra.mxu0 %v685
        %734 = vmatprep.subr.mxu0 0.0
        %735 = vmatpush1.msra.mxu0 %v686
        %736 = vmatprep.subr.mxu0 0.0
        %737 = vmatpush1.msra.mxu0 %v687
        %738 = vmatprep.subr.mxu0 0.0
        %739 = vmatpush1.msra.mxu0 %v688
        %740 = vmatprep.subr.mxu0 0.0
        %741 = vmatpush1.msra.mxu0 %v689
        %742 = vmatprep.subr.mxu0 0.0
        %743 = vmatpush1.msra.mxu0 %v690
        %744 = vmatprep.subr.mxu0 0.0
        %745 = vmatpush1.msra.mxu0 %v691
        %746 = vmatprep.subr.mxu0 0.0
        %747 = vmatpush1.msra.mxu0 %v692
        %748 = vmatprep.subr.mxu0 0.0
        %749 = vmatpush1.msra.mxu0 %v693
        %750 = vmatprep.subr.mxu0 0.0
        %751 = vmatpush1.msra.mxu0 %v694
        %752 = vmatprep.subr.mxu0 0.0
        %753 = vmatpush1.msra.mxu0 %v695
        %754 = vmatprep.subr.mxu0 0.0
        %755 = vmatpush1.msra.mxu0 %v696
        %756 = vmatprep.subr.mxu0 0.0
        %757 = vmatpush1.msra.mxu0 %v697
        %758 = vmatprep.subr.mxu0 0.0
        %759 = vmatpush1.msra.mxu0 %v698
        %760 = vmatprep.subr.mxu0 0.0
        %761 = vmatpush1.msra.mxu0 %v699
        %762 = vmatprep.subr.mxu0 0.0
        %763 = vmatpush1.msra.mxu0 %v700
        %764 = vmatprep.subr.mxu0 0.0
        %765 = vmatpush1.msra.mxu0 %v701
        %766 = vmatprep.mubr.f32.mxu0 %v607
        %767 = vmatmul.mubr.f32.gmra.mrb[0].mxu0 %v606
        %v768 = vpop.f32.mrb[0].mxu0
        %v769 = vadd.f32 0.0, %v768
        %v770 = vpop.f32.mrb[0].mxu0
        %771 = vmatprep.mubr.f32.mxu0 %v609
        %772 = vmatmul.mubr.f32.gmra.mrb[0].mxu0 %v608
        %v773 = vpop.f32.mrb[0].mxu0
        %v774 = vadd.f32 0.0, %v773
        %v775 = vpop.f32.mrb[0].mxu0
        %776 = vmatprep.mubr.f32.mxu0 %v611
        %777 = vmatmul.mubr.f32.gmra.mrb[0].mxu0 %v610
        %v778 = vpop.f32.mrb[0].mxu0
        %v779 = vadd.f32 0.0, %v778
        %v780 = vpop.f32.mrb[0].mxu0
        %781 = vmatprep.mubr.f32.mxu0 %v613
        %782 = vmatmul.mubr.f32.gmra.mrb[0].mxu0 %v612
        %v783 = vpop.f32.mrb[0].mxu0
        %v784 = vadd.f32 0.0, %v783
        %v785 = vpop.f32.mrb[0].mxu0
        %786 = vmatprep.mubr.f32.mxu0 %v615
        %787 = vmatmul.mubr.f32.gmra.mrb[0].mxu0 %v614
        %v788 = vpop.f32.mrb[0].mxu0
        %v789 = vadd.f32 0.0, %v788
        %v790 = vpop.f32.mrb[0].mxu0
        %791 = vmatprep.mubr.f32.mxu0 %v617
        %792 = vmatmul.mubr.f32.gmra.mrb[0].mxu0 %v616
        %v793 = vpop.f32.mrb[0].mxu0
        %v794 = vadd.f32 0.0, %v793
        %v795 = vpop.f32.mrb[0].mxu0
        %796 = vmatprep.mubr.f32.mxu0 %v619
        %797 = vmatmul.mubr.f32.gmra.mrb[0].mxu0 %v618
        %v798 = vpop.f32.mrb[0].mxu0
        %v799 = vadd.f32 0.0, %v798
        %v800 = vpop.f32.mrb[0].mxu0
        %801 = vmatprep.mubr.f32.mxu0 %v621
        %802 = vmatmul.mubr.f32.gmra.mrb[0].mxu0 %v620
        %v803 = vpop.f32.mrb[0].mxu0
        %v804 = vadd.f32 0.0, %v803
        %v805 = vpop.f32.mrb[0].mxu0
        %806 = vmatprep.mubr.f32.mxu0 %v623
        %807 = vmatmul.mubr.f32.gmra.mrb[0].mxu0 %v622
        %v808 = vpop.f32.mrb[0].mxu0
        %v809 = vadd.f32 0.0, %v808
        %v810 = vpop.f32.mrb[0].mxu0
        %811 = vmatprep.mubr.f32.mxu0 %v625
        %812 = vmatmul.mubr.f32.gmra.mrb[0].mxu0 %v624
        %v813 = vpop.f32.mrb[0].mxu0
        %v814 = vadd.f32 0.0, %v813
        %v815 = vpop.f32.mrb[0].mxu0
        %816 = vmatprep.mubr.f32.mxu0 %v627
        %817 = vmatmul.mubr.f32.gmra.mrb[0].mxu0 %v626
        %v818 = vpop.f32.mrb[0].mxu0
        %v819 = vadd.f32 0.0, %v818
        %v820 = vpop.f32.mrb[0].mxu0
        %821 = vmatprep.mubr.f32.mxu0 %v629
        %822 = vmatmul.mubr.f32.gmra.mrb[0].mxu0 %v628
        %v823 = vpop.f32.mrb[0].mxu0
        %v824 = vadd.f32 0.0, %v823
        %v825 = vpop.f32.mrb[0].mxu0
        %826 = vmatprep.mubr.f32.mxu0 %v631
        %827 = vmatmul.mubr.f32.gmra.mrb[0].mxu0 %v630
        %v828 = vpop.f32.mrb[0].mxu0
        %v829 = vadd.f32 0.0, %v828
        %v830 = vpop.f32.mrb[0].mxu0
        %831 = vmatprep.mubr.f32.mxu0 %v633
        %832 = vmatmul.mubr.f32.gmra.mrb[0].mxu0 %v632
        %v833 = vpop.f32.mrb[0].mxu0
        %v834 = vadd.f32 0.0, %v833
        %v835 = vpop.f32.mrb[0].mxu0
        %836 = vmatprep.mubr.f32.mxu0 %v635
        %837 = vmatmul.mubr.f32.gmra.mrb[0].mxu0 %v634
        %v838 = vpop.f32.mrb[0].mxu0
        %v839 = vadd.f32 0.0, %v838
        %v840 = vpop.f32.mrb[0].mxu0
        %841 = vmatprep.mubr.f32.mxu0 %v637
        %842 = vmatmul.mubr.f32.gmra.mrb[0].mxu0 %v636
        %v843 = vpop.f32.mrb[0].mxu0
        %v844 = vadd.f32 0.0, %v843
        %v845 = vpop.f32.mrb[0].mxu0
        %846 = vmatprep.mubr.f32.mxu0 %v639
        %847 = vmatmul.mubr.f32.gmra.mrb[0].mxu0 %v638
        %v848 = vpop.f32.mrb[0].mxu0
        %v849 = vadd.f32 0.0, %v848
        %v850 = vpop.f32.mrb[0].mxu0
        %851 = vmatprep.mubr.f32.mxu0 %v641
        %852 = vmatmul.mubr.f32.gmra.mrb[0].mxu0 %v640
        %v853 = vpop.f32.mrb[0].mxu0
        %v854 = vadd.f32 0.0, %v853
        %v855 = vpop.f32.mrb[0].mxu0
        %856 = vmatprep.mubr.f32.mxu0 %v643
        %857 = vmatmul.mubr.f32.gmra.mrb[0].mxu0 %v642
        %v858 = vpop.f32.mrb[0].mxu0
        %v859 = vadd.f32 0.0, %v858
        %v860 = vpop.f32.mrb[0].mxu0
        %861 = vmatprep.mubr.f32.mxu0 %v645
        %862 = vmatmul.mubr.f32.gmra.mrb[0].mxu0 %v644
        %v863 = vpop.f32.mrb[0].mxu0
        %v864 = vadd.f32 0.0, %v863
        %v865 = vpop.f32.mrb[0].mxu0
        %866 = vmatprep.mubr.f32.mxu0 %v647
        %867 = vmatmul.mubr.f32.gmra.mrb[0].mxu0 %v646
        %v868 = vpop.f32.mrb[0].mxu0
        %v869 = vadd.f32 0.0, %v868
        %v870 = vpop.f32.mrb[0].mxu0
        %871 = vmatprep.mubr.f32.mxu0 %v649
        %872 = vmatmul.mubr.f32.gmra.mrb[0].mxu0 %v648
        %v873 = vpop.f32.mrb[0].mxu0
        %v874 = vadd.f32 0.0, %v873
        %v875 = vpop.f32.mrb[0].mxu0
        %876 = vmatprep.mubr.f32.mxu0 %v651
        %877 = vmatmul.mubr.f32.gmra.mrb[0].mxu0 %v650
        %v878 = vpop.f32.mrb[0].mxu0
        %v879 = vadd.f32 0.0, %v878
        %v880 = vpop.f32.mrb[0].mxu0
        %881 = vmatprep.mubr.f32.mxu0 %v653
        %882 = vmatmul.mubr.f32.gmra.mrb[0].mxu0 %v652
        %v883 = vpop.f32.mrb[0].mxu0
        %v884 = vadd.f32 0.0, %v883
        %v885 = vpop.f32.mrb[0].mxu0
        %886 = vmatprep.mubr.f32.mxu0 %v655
        %887 = vmatmul.mubr.f32.gmra.mrb[0].mxu0 %v654
        %v888 = vpop.f32.mrb[0].mxu0
        %v889 = vadd.f32 0.0, %v888
        %v890 = vpop.f32.mrb[0].mxu0
        %891 = vmatprep.mubr.f32.mxu0 %v657
        %892 = vmatmul.mubr.f32.gmra.mrb[0].mxu0 %v656
        %v893 = vpop.f32.mrb[0].mxu0
        %v894 = vadd.f32 0.0, %v893
        %v895 = vpop.f32.mrb[0].mxu0
        %896 = vmatprep.mubr.f32.mxu0 %v659
        %897 = vmatmul.mubr.f32.gmra.mrb[0].mxu0 %v658
        %v898 = vpop.f32.mrb[0].mxu0
        %v899 = vadd.f32 0.0, %v898
        %v900 = vpop.f32.mrb[0].mxu0
        %901 = vmatprep.mubr.f32.mxu0 %v661
        %902 = vmatmul.mubr.f32.gmra.mrb[0].mxu0 %v660
        %v903 = vpop.f32.mrb[0].mxu0
        %v904 = vadd.f32 0.0, %v903
        %v905 = vpop.f32.mrb[0].mxu0
        %906 = vmatprep.mubr.f32.mxu0 %v663
        %907 = vmatmul.mubr.f32.gmra.mrb[0].mxu0 %v662
        %v908 = vpop.f32.mrb[0].mxu0
        %v909 = vadd.f32 0.0, %v908
        %v910 = vpop.f32.mrb[0].mxu0
        %911 = vmatprep.mubr.f32.mxu0 %v665
        %912 = vmatmul.mubr.f32.gmra.mrb[0].mxu0 %v664
        %v913 = vpop.f32.mrb[0].mxu0
        %v914 = vadd.f32 0.0, %v913
        %v915 = vpop.f32.mrb[0].mxu0
        %916 = vmatprep.mubr.f32.mxu0 %v667
        %917 = vmatmul.mubr.f32.gmra.mrb[0].mxu0 %v666
        %v918 = vpop.f32.mrb[0].mxu0
        %v919 = vadd.f32 0.0, %v918
        %v920 = vpop.f32.mrb[0].mxu0
        %921 = vmatprep.mubr.f32.mxu0 %v669
        %922 = vmatmul.mubr.f32.gmra.mrb[0].mxu0 %v668
        %v923 = vpop.f32.mrb[0].mxu0
        %v924 = vadd.f32 0.0, %v923
        %v925 = vpop.f32.mrb[0].mxu0
        %926 = vdwg.mxu0
        %v927 = vtanh.pop %v769
        %v928 = vtanh.pop %v774
        %v929 = vtanh.pop %v779
        %v930 = vtanh.pop %v784
        %v931 = vtanh.pop %v789
        %v932 = vtanh.pop %v794
        %v933 = vtanh.pop %v799
        %v934 = vtanh.pop %v804
        %v935 = vtanh.pop %v809
        %v936 = vtanh.pop %v814
        %v937 = vtanh.pop %v819
        %v938 = vtanh.pop %v824
        %v939 = vtanh.pop %v829
        %v940 = vtanh.pop %v834
        %v941 = vtanh.pop %v839
        %v942 = vtanh.pop %v844
        %v943 = vtanh.pop %v849
        %v944 = vtanh.pop %v854
        %v945 = vtanh.pop %v859
        %v946 = vtanh.pop %v864
        %v947 = vtanh.pop %v869
        %v948 = vtanh.pop %v874
        %v949 = vtanh.pop %v879
        %v950 = vtanh.pop %v884
        %v951 = vtanh.pop %v889
        %v952 = vtanh.pop %v894
        %v953 = vtanh.pop %v899
        %v954 = vtanh.pop %v904
        %v955 = vtanh.pop %v909
        %v956 = vtanh.pop %v914
        %v957 = vtanh.pop %v919
        %v958 = vtanh.pop %v924
        %959 = vst [vmem:[%s218] sm:$0xff] %v927
        %960 = vst [vmem:[%s218 + $0x8] sm:$0xff] %v928
        %961 = vst [vmem:[%s218 + $0x10] sm:$0xff] %v929
        %962 = vst [vmem:[%s218 + $0x18] sm:$0xff] %v930
        %963 = vst [vmem:[%s218 + $0x20] sm:$0xff] %v931
        %964 = vst [vmem:[%s218 + $0x28] sm:$0xff] %v932
        %965 = vst [vmem:[%s218 + $0x30] sm:$0xff] %v933
        %966 = vst [vmem:[%s218 + $0x38] sm:$0xff] %v934
        %967 = vst [vmem:[%s218 + $0x40] sm:$0xff] %v935
        %968 = vst [vmem:[%s218 + $0x48] sm:$0xff] %v936
        %969 = vst [vmem:[%s218 + $0x50] sm:$0xff] %v937
        %970 = vst [vmem:[%s218 + $0x58] sm:$0xff] %v938
        %971 = vst [vmem:[%s218 + $0x60] sm:$0xff] %v939
        %972 = vst [vmem:[%s218 + $0x68] sm:$0xff] %v940
        %973 = vst [vmem:[%s218 + $0x70] sm:$0xff] %v941
        %974 = vst [vmem:[%s218 + $0x78] sm:$0xff] %v942
        %975 = vst [vmem:[%s218 + $0x80] sm:$0xff] %v943
        %976 = vst [vmem:[%s218 + $0x88] sm:$0xff] %v944
        %977 = vst [vmem:[%s218 + $0x90] sm:$0xff] %v945
        %978 = vst [vmem:[%s218 + $0x98] sm:$0xff] %v946
        %979 = vst [vmem:[%s218 + $0xa0] sm:$0xff] %v947
        %980 = vst [vmem:[%s218 + $0xa8] sm:$0xff] %v948
        %981 = vst [vmem:[%s218 + $0xb0] sm:$0xff] %v949
        %982 = vst [vmem:[%s218 + $0xb8] sm:$0xff] %v950
        %983 = vst [vmem:[%s218 + $0xc0] sm:$0xff] %v951
        %984 = vst [vmem:[%s218 + $0xc8] sm:$0xff] %v952
        %985 = vst [vmem:[%s218 + $0xd0] sm:$0xff] %v953
        %986 = vst [vmem:[%s218 + $0xd8] sm:$0xff] %v954
        %987 = vst [vmem:[%s218 + $0xe0] sm:$0xff] %v955
        %988 = vst [vmem:[%s218 + $0xe8] sm:$0xff] %v956
        %989 = vst [vmem:[%s218 + $0xf0] sm:$0xff] %v957
        %990 = vst [vmem:[%s218 + $0xf8] sm:$0xff] %v958
        %s991 = sand.u32 %s97, 1
        %s992 = scalar_lea.sflag [#allocation4], %s991
        %s993 = sand.u32 %s97, 1
        %s994 = smul.addr %s993, 256
        %s995 = scalar_lea.vmem [#allocation8], %s994
        // Predicated region
        $region45: #{tpu_custom_call.1} parent=31 // pred_check
          %p996 = pneg %p107
        $region46: #{tpu_custom_call.1} parent=31 // pred_check_branch
          %998 = sbr.rel (%p996) target = $region48
        $region47: #{tpu_custom_call.1} parent=31 // pred_region
          %s999 = smul.u32 32, %s21
          %s1001 = ssub.s32 4096, 4096
          %1002 = vsyncadd %s992, %s1001
          %s1003 = smul.addr %s999, 128
          %s1004 = scalar_lea.hbm %s3, %s1003
          %s1005 = sshll.u32 %s995, 4
          %s1006 = int_to_ptr.vmem [resolvable:$true] %s1005
          %1011 = dma.vmem_to_hbm [thread:$0]  %s1006, 4096, %s1004, %s992, 128, 128, 8
        $region48: #{tpu_custom_call.1} parent=31 // pred_fallthru
          _
      $region32: #{tpu_custom_call.1} parent=5 // pred_fallthru
        _
      %p1012 = scmp.le.s32.totalorder 2, %s16
      // Predicated region
      $region49: #{tpu_custom_call.1} parent=5 // pred_check
        %p1013 = pneg %p1012
      $region50: #{tpu_custom_call.1} parent=5 // pred_check_branch
        %1015 = sbr.rel (%p1013) target = $region52
      $region51: #{tpu_custom_call.1} parent=5 // pred_region
        %s1016 = ssub.s32 %s16, 2
        // Predicated region
        $region53: #{tpu_custom_call.1} parent=51 // pred_check
          %p1017 = pneg %p113
        $region54: #{tpu_custom_call.1} parent=51 // pred_check_branch
          %1019 = sbr.rel (%p1017) target = $region56
        $region55: #{tpu_custom_call.1} parent=51 // pred_region
          %s1020 = sand.u32 %s98, 1
          %s1021 = scalar_lea.sflag [#allocation4], %s1020
          %s1022 = sand.u32 %s98, 1
          %s1023 = smul.addr %s1022, 256
          %s1024 = scalar_lea.vmem [#allocation8], %s1023
          %1025 = dma.done %s1021, 4096
        $region56: #{tpu_custom_call.1} parent=51 // pred_fallthru
          _
      $region52: #{tpu_custom_call.1} parent=5 // pred_fallthru
        _
    $region6: #{tpu_custom_call.1} parent=1 // loop_footer
      %s20 = sadd.s32 1, %s16
    $region7: #{tpu_custom_call.1} parent=1 // loop_footer_branch
      %15 = sbr.rel target = $region3
    $region8: #{tpu_custom_call.1} parent=1 // loop_exit
      _
    %1026 = vsyncpa [#allocation3], 1
    %s1027 = scalar_lea.sflag [#allocation3], 1
    %1028 = vsyncpa %s1027, 1
    %1029 = vsyncpa [#allocation6], 1
    %1030 = vsyncpa [#allocation4], 1
    %s1031 = scalar_lea.sflag [#allocation4], 1
    %1032 = vsyncpa %s1031, 1

</llo_original>
